<compile_context>
chip_gen: v7x
topology: tpu7x:2x2x1
jax: 0.10.0
libtpu: 0.0.40
codegen_flags: <defaults>
</compile_context>

<pallas_src>
import functools

import jax
import jax.numpy as jnp
from jax.experimental import pallas as pl
from jax.experimental.pallas import tpu as pltpu

MARGIN = 2.0
_PAIRWISE_EPS = 1e-6  # matches torch F.pairwise_distance default eps


def _round_up(x, m):
    return ((x + m - 1) // m) * m


def _cdiv(a, b):
    return -(-a // b)


def _contrastive_loss_kernel(o1_ref, o2_ref, label_ref, out_ref, *,
                             true_batch, margin, block_rows, steps_per_core):
    c = pl.program_id(0)          # parallel (per-core) axis
    i = pl.program_id(1)          # streaming reduction axis
    n = pl.num_programs(1)

    @pl.when(i == 0)
    def _init():
        out_ref[...] = jnp.zeros_like(out_ref)

    # Native-dtype DMA; upcast to f32 on the VPU (free slot, mandatory on v5e).
    o1 = o1_ref[...].astype(jnp.float32)        # (TB, D)
    o2 = o2_ref[...].astype(jnp.float32)        # (TB, D)
    label = label_ref[...]                      # (TB, 1) f32

    # torch adds eps to the raw difference before the norm.
    diff = o1 - o2 + _PAIRWISE_EPS
    sq_dist = jnp.sum(diff * diff, axis=-1, keepdims=True)     # (TB, 1)
    dist = jnp.sqrt(sq_dist)                                    # (TB, 1)
    hinge = jnp.maximum(margin - dist, 0.0)
    contrib = (1.0 - label) * sq_dist + label * hinge * hinge   # (TB, 1)

    # Mask rows past the true batch. Covers both the ragged last block (garbage
    # tail) and grid-padding steps whose block index was clamped in the
    # index_map. Select applied AFTER contrib so NaN/Inf garbage is discarded.
    g = c * steps_per_core + i                  # logical (unclamped) block index
    row = jax.lax.broadcasted_iota(jnp.int32, contrib.shape, 0) + g * block_rows
    contrib = jnp.where(row < true_batch, contrib, 0.0)

    # Accumulate directly into this core's resident output block.
    out_ref[...] += jnp.sum(contrib)

    @pl.when(i == n - 1)
    def _finalize():
        # Each per-core partial is pre-divided by the true batch size; the
        # wrapper just sums the partials.
        out_ref[...] = out_ref[...] * (1.0 / true_batch)


def _default_num_cores():
    # v7x has 2 TensorCores per chip; v5e/v6e have 1.
    try:
        kind = jax.devices()[0].device_kind.lower()
    except Exception:
        return 1
    return 2 if ("v7" in kind or "7x" in kind) else 1


def contrastive_loss(output1, output2, label, *, margin=MARGIN,
                     block_rows=None, num_cores=None):
    """output1, output2: (B, D); label: (B,) or (B, 1). Returns scalar f32."""
    B, D = output1.shape

    # Keep the native floating dtype for the streamed inputs (bf16/f16/f32);
    # only demote exotic/64-bit dtypes. Compute stays f32 inside the kernel.
    dtype = jnp.promote_types(output1.dtype, output2.dtype)
    if (not jnp.issubdtype(dtype, jnp.floating)) or jnp.dtype(dtype).itemsize > 4:
        dtype = jnp.float32
    output1 = output1.astype(dtype)
    output2 = output2.astype(dtype)
    label = jnp.reshape(label, (B, 1)).astype(jnp.float32)
    itemsize = jnp.dtype(dtype).itemsize

    # ---- per-generation VMEM budget ------------------------------------------
    try:
        vmem_cap = int(getattr(pltpu.get_tpu_info(), "vmem_capacity_bytes",
                               64 * 1024 * 1024))
    except Exception:
        vmem_cap = 64 * 1024 * 1024            # conservative (v7x per-core VMEM)

    # ---- tile sizing ----------------------------------------------------------
    if block_rows is not None:
        TB = int(block_rows)
    elif B <= 8:
        TB = B                                  # single full-extent block
    else:
        # ~4 MiB per input per double-buffer (16 already = 2 inputs x 2 buffers
        # was the old bug: the divisor below no longer double-counts itemsize).
        per_buffer = min(4 * 1024 * 1024, vmem_cap // 16)
        budget_rows = max(8, per_buffer // (D * itemsize))
        TB = min(4096, budget_rows, _round_up(B, 8))
        TB = max(8, (TB // 8) * 8)              # sublane multiple

    total_blocks = _cdiv(B, TB)
    nc = num_cores if num_cores is not None else _default_num_cores()
    nc = max(1, min(int(nc), total_blocks))
    steps = _cdiv(total_blocks, nc)
    padded_blocks = nc * steps
    last_block = total_blocks - 1

    def row_block(c, i):
        g = c * steps + i
        if padded_blocks != total_blocks:
            # Clamp grid-padding steps onto the last real block (kept in-bounds);
            # their rows are fully masked inside the kernel.
            g = jnp.minimum(g, last_block)
        return g

    kernel = functools.partial(
        _contrastive_loss_kernel, true_batch=B, margin=float(margin),
        block_rows=TB, steps_per_core=steps)

    # VMEM requirement: 2 inputs x 2 buffers x (TB, D) + 2 x (TB, 1) label blocks
    # (lane-padded to 128) + headroom, capped below physical VMEM.
    d_pad = _round_up(D, 128)
    in_block_bytes = TB * d_pad * itemsize
    label_block_bytes = _cdiv(max(TB, 8), 8) * 8 * 128 * 4
    vmem_needed = 4 * in_block_bytes + 2 * label_block_bytes + 256 * 1024
    vmem_limit = min(max(vmem_needed + 4 * 1024 * 1024, 16 * 1024 * 1024),
                     max(vmem_cap * 3 // 4, vmem_needed + 1024 * 1024))

    cost = pl.CostEstimate(
        flops=5 * B * D + 8 * B,
        transcendentals=B,                           # one sqrt per row
        bytes_accessed=2 * B * D * itemsize + 4 * B + 4 * nc,
    )

    partials = pl.pallas_call(
        kernel,
        out_shape=jax.ShapeDtypeStruct((nc, 1, 1), jnp.float32),
        grid_spec=pltpu.PrefetchScalarGridSpec(
            num_scalar_prefetch=0,
            grid=(nc, steps),
            in_specs=[
                pl.BlockSpec((TB, D), lambda c, i: (row_block(c, i), 0)),
                pl.BlockSpec((TB, D), lambda c, i: (row_block(c, i), 0)),
                pl.BlockSpec((TB, 1), lambda c, i: (row_block(c, i), 0)),
            ],
            out_specs=pl.BlockSpec((1, 1, 1), lambda c, i: (c, 0, 0)),
        ),
        compiler_params=pltpu.CompilerParams(
            dimension_semantics=("parallel", "arbitrary"),
            vmem_limit_bytes=int(vmem_limit),
        ),
        cost_estimate=cost,
    )(output1, output2, label)

    # Sum the per-core partials (each already divided by the true batch size).
    return jnp.sum(partials)


def _reference_loss(output1, output2, label, margin=MARGIN):
    o1 = output1.astype(jnp.float32)
    o2 = output2.astype(jnp.float32)
    lab = jnp.reshape(label, (-1, 1)).astype(jnp.float32)
    dist = jnp.sqrt(jnp.sum((o1 - o2 + _PAIRWISE_EPS) ** 2, axis=-1, keepdims=True))
    return jnp.mean((1.0 - lab) * dist ** 2
                    + lab * jnp.maximum(margin - dist, 0.0) ** 2)


if __name__ == "__main__":
    key = jax.random.PRNGKey(0)

    # Case 1: small shapes consistent with the module (single-block path).
    k1, k2, k3 = jax.random.split(key, 3)
    B, D = 8, 32
    output1 = jax.random.normal(k1, (B, D), dtype=jnp.float32)
    output2 = jax.random.normal(k2, (B, D), dtype=jnp.float32)
    label = jax.random.bernoulli(k3, 0.5, (B, 1)).astype(jnp.float32)

    loss = contrastive_loss(output1, output2, label)
    jax.block_until_ready(loss)
    loss_ref = _reference_loss(output1, output2, label)
    assert jnp.allclose(loss, loss_ref, rtol=1e-5, atol=1e-5), (loss, loss_ref)

    # Case 2: multi-tile grid with a ragged tail (no wrapper padding; in-kernel mask).
    k4, k5, k6 = jax.random.split(jax.random.PRNGKey(1), 3)
    B2, D2, TB2 = 40, 128, 16        # B2 % TB2 != 0 -> partial last block
    o1b = jax.random.normal(k4, (B2, D2), dtype=jnp.float32)
    o2b = jax.random.normal(k5, (B2, D2), dtype=jnp.float32)
    lb = jax.random.bernoulli(k6, 0.5, (B2, 1)).astype(jnp.float32)

    loss2 = contrastive_loss(o1b, o2b, lb, block_rows=TB2)
    jax.block_until_ready(loss2)
    loss2_ref = _reference_loss(o1b, o2b, lb)
    assert jnp.allclose(loss2, loss2_ref, rtol=1e-4, atol=1e-5), (loss2, loss2_ref)

    # Case 3: bf16 inputs (native-dtype DMA + in-kernel f32 cast), forced 2-core
    # split with an uneven block count (exercises the clamped index_map path).
    k7, k8, k9 = jax.random.split(jax.random.PRNGKey(2), 3)
    B3, D3, TB3 = 100, 64, 16
    o1c = jax.random.normal(k7, (B3, D3), dtype=jnp.float32).astype(jnp.bfloat16)
    o2c = jax.random.normal(k8, (B3, D3), dtype=jnp.float32).astype(jnp.bfloat16)
    lc = jax.random.bernoulli(k9, 0.5, (B3,)).astype(jnp.float32)

    loss3 = contrastive_loss(o1c, o2c, lc, block_rows=TB3, num_cores=2)
    jax.block_until_ready(loss3)
    loss3_ref = _reference_loss(o1c, o2c, lc)
    assert jnp.allclose(loss3, loss3_ref, rtol=1e-4, atol=1e-5), (loss3, loss3_ref)

    print("KERNEL_OK")
</pallas_src>

<mosaic_0001>
module attributes {stable_mosaic.version = 11 : i64} {
  func.func @_contrastive_loss_kernel(%arg0: i32, %arg1: i32, %arg2: memref<8x32xf32, #tpu.memory_space<vmem>>, %arg3: memref<8x32xf32, #tpu.memory_space<vmem>>, %arg4: memref<8x1xf32, #tpu.memory_space<vmem>>, %arg5: memref<1x1x1xf32, #tpu.memory_space<vmem>>) attributes {dimension_semantics = [#tpu.dimension_semantics<parallel>, #tpu.dimension_semantics<arbitrary>], iteration_bounds = array<i64: 1, 1>, scalar_prefetch = 0 : i64, scratch_operands = 0 : i64, tpu.core_type = #tpu.core_type<tc>, window_params = [{transform_indices = @transform_0, window_bounds = array<i64: 8, 32>}, {transform_indices = @transform_1, window_bounds = array<i64: 8, 32>}, {transform_indices = @transform_2, window_bounds = array<i64: 8, 1>}, {transform_indices = @transform_3, window_bounds = array<i64: 1, 1, 1>}]} {
    %c0_i32 = arith.constant 0 : i32
    %0 = arith.cmpi eq, %arg1, %c0_i32 : i32
    %1 = arith.extui %0 : i1 to i32
    %c0_i32_0 = arith.constant 0 : i32
    %2 = arith.cmpi ne, %1, %c0_i32_0 : i32
    scf.if %2 {
      %cst_21 = arith.constant 0.000000e+00 : f32
      %44 = vector.broadcast %cst_21 : f32 to vector<1x1x1xf32>
      %c0_22 = arith.constant 0 : index
      %c0_23 = arith.constant 0 : index
      %c0_24 = arith.constant 0 : index
      %45 = vector.load %arg5[%c0_22, %c0_23, %c0_24] : memref<1x1x1xf32, #tpu.memory_space<vmem>>, vector<1x1x1xf32>
      tpu.vector_store %arg5[%c0_22, %c0_23, %c0_24], %44 {strides = array<i32>} : memref<1x1x1xf32, #tpu.memory_space<vmem>>, vector<1x1x1xf32>,
    } else {
    }
    %c0 = arith.constant 0 : index
    %c0_1 = arith.constant 0 : index
    %3 = vector.load %arg2[%c0, %c0_1] : memref<8x32xf32, #tpu.memory_space<vmem>>, vector<8x32xf32>
    %c0_2 = arith.constant 0 : index
    %c0_3 = arith.constant 0 : index
    %4 = vector.load %arg3[%c0_2, %c0_3] : memref<8x32xf32, #tpu.memory_space<vmem>>, vector<8x32xf32>
    %c0_4 = arith.constant 0 : index
    %c0_5 = arith.constant 0 : index
    %5 = vector.load %arg4[%c0_4, %c0_5] : memref<8x1xf32, #tpu.memory_space<vmem>>, vector<8x1xf32>
    %6 = arith.subf %3, %4 : vector<8x32xf32>
    %cst = arith.constant 9.99999997E-7 : f32
    %7 = vector.broadcast %cst : f32 to vector<8x32xf32>
    %8 = arith.addf %6, %7 : vector<8x32xf32>
    %9 = arith.mulf %8, %8 : vector<8x32xf32>
    %cst_6 = arith.constant dense<0.000000e+00> : vector<8xf32>
    %10 = vector.multi_reduction <add>, %9, %cst_6 [1] : vector<8x32xf32> to vector<8xf32>
    %11 = vector.shape_cast %10 : vector<8xf32> to vector<8x1xf32>
    %12 = math.sqrt %11 : vector<8x1xf32>
    %cst_7 = arith.constant 2.000000e+00 : f32
    %13 = vector.broadcast %cst_7 : f32 to vector<8x1xf32>
    %14 = arith.subf %13, %12 : vector<8x1xf32>
    %cst_8 = arith.constant 0.000000e+00 : f32
    %15 = vector.broadcast %cst_8 : f32 to vector<8x1xf32>
    %16 = arith.maximumf %14, %15 : vector<8x1xf32>
    %cst_9 = arith.constant 1.000000e+00 : f32
    %17 = vector.broadcast %cst_9 : f32 to vector<8x1xf32>
    %18 = arith.subf %17, %5 : vector<8x1xf32>
    %19 = arith.mulf %18, %11 : vector<8x1xf32>
    %20 = arith.mulf %5, %16 : vector<8x1xf32>
    %21 = arith.mulf %20, %16 : vector<8x1xf32>
    %22 = arith.addf %19, %21 : vector<8x1xf32>
    %c1_i32 = arith.constant 1 : i32
    %23 = arith.muli %arg0, %c1_i32 : i32
    %24 = arith.addi %23, %arg1 : i32
    %25 = tpu.iota {dimensions = array<i32: 0>} : vector<8x1xi32>
    %c8_i32 = arith.constant 8 : i32
    %26 = arith.muli %24, %c8_i32 : i32
    %27 = vector.broadcast %26 : i32 to vector<8x1xi32>
    %28 = arith.addi %25, %27 : vector<8x1xi32>
    %c8_i32_10 = arith.constant 8 : i32
    %29 = vector.broadcast %c8_i32_10 : i32 to vector<8x1xi32>
    %30 = arith.cmpi slt, %28, %29 : vector<8x1xi32>
    %cst_11 = arith.constant 0.000000e+00 : f32
    %31 = vector.broadcast %cst_11 : f32 to vector<8x1xf32>
    %32 = arith.select %30, %22, %31 : vector<8x1xi1>, vector<8x1xf32>
    %c0_12 = arith.constant 0 : index
    %c0_13 = arith.constant 0 : index
    %c0_14 = arith.constant 0 : index
    %33 = vector.load %arg5[%c0_12, %c0_13, %c0_14] : memref<1x1x1xf32, #tpu.memory_space<vmem>>, vector<1x1x1xf32>
    %34 = vector.shape_cast %32 : vector<8x1xf32> to vector<1x8x1xf32>
    %cst_15 = arith.constant dense<0.000000e+00> : vector<1xf32>
    %35 = vector.multi_reduction <add>, %34, %cst_15 [1, 2] : vector<1x8x1xf32> to vector<1xf32>
    %36 = vector.shape_cast %35 : vector<1xf32> to vector<1x1x1xf32>
    %37 = vector.extract %36[0, 0, 0] : f32 from vector<1x1x1xf32>
    %38 = vector.broadcast %37 : f32 to vector<1x1x1xf32>
    %39 = arith.addf %33, %38 : vector<1x1x1xf32>
    %c0_16 = arith.constant 0 : index
    %c0_17 = arith.constant 0 : index
    %c0_18 = arith.constant 0 : index
    %40 = vector.load %arg5[%c0_16, %c0_17, %c0_18] : memref<1x1x1xf32, #tpu.memory_space<vmem>>, vector<1x1x1xf32>
    tpu.vector_store %arg5[%c0_16, %c0_17, %c0_18], %39 {strides = array<i32>} : memref<1x1x1xf32, #tpu.memory_space<vmem>>, vector<1x1x1xf32>,
    %c0_i32_19 = arith.constant 0 : i32
    %41 = arith.cmpi eq, %arg1, %c0_i32_19 : i32
    %42 = arith.extui %41 : i1 to i32
    %c0_i32_20 = arith.constant 0 : i32
    %43 = arith.cmpi ne, %42, %c0_i32_20 : i32
    scf.if %43 {
      %c0_21 = arith.constant 0 : index
      %c0_22 = arith.constant 0 : index
      %c0_23 = arith.constant 0 : index
      %44 = vector.load %arg5[%c0_21, %c0_22, %c0_23] : memref<1x1x1xf32, #tpu.memory_space<vmem>>, vector<1x1x1xf32>
      %cst_24 = arith.constant 1.250000e-01 : f32
      %45 = vector.broadcast %cst_24 : f32 to vector<1x1x1xf32>
      %46 = arith.mulf %44, %45 : vector<1x1x1xf32>
      %c0_25 = arith.constant 0 : index
      %c0_26 = arith.constant 0 : index
      %c0_27 = arith.constant 0 : index
      %47 = vector.load %arg5[%c0_25, %c0_26, %c0_27] : memref<1x1x1xf32, #tpu.memory_space<vmem>>, vector<1x1x1xf32>
      tpu.vector_store %arg5[%c0_25, %c0_26, %c0_27], %46 {strides = array<i32>} : memref<1x1x1xf32, #tpu.memory_space<vmem>>, vector<1x1x1xf32>,
    } else {
    }
    return
  }
  func.func @transform_0(%arg0: i32, %arg1: i32) -> (i32, i32) {
    %c1_i32 = arith.constant 1 : i32
    %0 = arith.muli %arg0, %c1_i32 : i32
    %1 = arith.addi %0, %arg1 : i32
    %c0_i32 = arith.constant 0 : i32
    %c0_i32_0 = arith.constant 0 : i32
    return %1, %c0_i32 : i32, i32
  }
  func.func @transform_1(%arg0: i32, %arg1: i32) -> (i32, i32) {
    %c1_i32 = arith.constant 1 : i32
    %0 = arith.muli %arg0, %c1_i32 : i32
    %1 = arith.addi %0, %arg1 : i32
    %c0_i32 = arith.constant 0 : i32
    %c0_i32_0 = arith.constant 0 : i32
    return %1, %c0_i32 : i32, i32
  }
  func.func @transform_2(%arg0: i32, %arg1: i32) -> (i32, i32) {
    %c1_i32 = arith.constant 1 : i32
    %0 = arith.muli %arg0, %c1_i32 : i32
    %1 = arith.addi %0, %arg1 : i32
    %c0_i32 = arith.constant 0 : i32
    %c0_i32_0 = arith.constant 0 : i32
    return %1, %c0_i32 : i32, i32
  }
  func.func @transform_3(%arg0: i32, %arg1: i32) -> (i32, i32, i32) {
    %c0_i32 = arith.constant 0 : i32
    %c0_i32_0 = arith.constant 0 : i32
    %c0_i32_1 = arith.constant 0 : i32
    return %arg0, %c0_i32, %c0_i32_0 : i32, i32, i32
  }
}

</mosaic_0001>

<llo_original>
// kernel: tpu_custom_call.1
$region0: #{tpu_custom_call.1}
  #allocation0 [shape = 'u32[]', space=smem, size = 0x4, offset = 0x4, fixed_abs, tag = 'smem constant byte address 0x4 - core index']
  #allocation1 [shape = 'u32[144,128]{1,0:T(1,128)}', space=vmem, size = 0x12000, scoped, tag = 'internal scratch']
  %s0 = inlined_call_operand.vmem [shape: f32[8,32], index: 0, kind: input, shape index: {}]
  %s1 = inlined_call_operand.hbm [shape: f32[8,32], index: 1, kind: input, shape index: {}]
  %s2 = inlined_call_operand.vmem [shape: f32[8,1], index: 2, kind: input, shape index: {}]
  %s3 = inlined_call_operand.hbm [shape: f32[1,1,1], index: 3, kind: output, shape index: {}]
  %s4 = sld [smem:[#allocation0]]
  $region34: #{tpu_custom_call.1} parent=0
    _
  %s6 = ssub.s32 1, %s4
  %s7 = scalar_select 0, %s6, %s4
  $region1: #{tpu_custom_call.1} parent=0
    #allocation2 [shape = 'u8[4096]{0}', space=vmem, size = 0x1000, scoped, tag = 'input window, operand 1, single buffered']
    #allocation3 [shape = 's32[1]{0}', space=sflag, size = 0x4, scoped, tag = 'scoped memory for tpu_custom_call.1']
    #allocation4 [shape = 's32[1]{0}', space=sflag, size = 0x4, scoped, tag = 'scoped memory for tpu_custom_call.1']
    #allocation5 [shape = 'u8[512]{0}', space=vmem, size = 0x400, scoped, tag = 'output window, operand 0, single buffered']
    %8 = vsyncpa [#allocation3], 0
    %9 = vsyncpa [#allocation4], 0
    // Predicated region
    $region2: #{tpu_custom_call.1} parent=1 // pred_check
      _
    $region3: #{tpu_custom_call.1} parent=1 // pred_check_branch
      %11 = sbr.rel (0) target = $region5
    $region4: #{tpu_custom_call.1} parent=1 // pred_region
      %s12 = sadd.s32 0, 0
      %p13 = scmp.lt.s32.totalorder %s12, 0
      %s14 = scalar_select %p13, %s12, 0
      %s15 = smul.addr %s14, 8
      %s16 = scalar_lea.vmem %s0, %s15
      %s17 = sadd.s32 0, 0
    $region5: #{tpu_custom_call.1} parent=1 // pred_fallthru
      _
    // Predicated region
    $region6: #{tpu_custom_call.1} parent=1 // pred_check
      _
    $region7: #{tpu_custom_call.1} parent=1 // pred_check_branch
      %19 = sbr.rel (0) target = $region9
    $region8: #{tpu_custom_call.1} parent=1 // pred_region
      %s20 = sadd.s32 0, 0
      %s22 = ssub.s32 128, 128
      %23 = vsyncadd [#allocation3], %s22
      %s24 = smul.addr %s20, 128
      %s25 = scalar_lea.hbm %s1, %s24
      %s27 = sshll.u32 [#allocation2], 4
      %s28 = int_to_ptr.vmem [resolvable:$true] %s27
      %30 = dma.hbm_to_vmem [thread:$0]  %s25, 128, %s28, [#allocation3]
    $region9: #{tpu_custom_call.1} parent=1 // pred_fallthru
      _
    // Predicated region
    $region10: #{tpu_custom_call.1} parent=1 // pred_check
      _
    $region11: #{tpu_custom_call.1} parent=1 // pred_check_branch
      %32 = sbr.rel (0) target = $region13
    $region12: #{tpu_custom_call.1} parent=1 // pred_region
      %s33 = sadd.s32 0, 0
      %p34 = scmp.lt.s32.totalorder %s33, 0
      %s35 = scalar_select %p34, %s33, 0
      %s36 = smul.addr %s35, 8
      %s37 = scalar_lea.vmem %s2, %s36
      %s38 = sadd.s32 0, 0
    $region13: #{tpu_custom_call.1} parent=1 // pred_fallthru
      _
    // Predicated region
    $region14: #{tpu_custom_call.1} parent=1 // pred_check
      _
    $region15: #{tpu_custom_call.1} parent=1 // pred_check_branch
      %40 = sbr.rel (0) target = $region17
    $region16: #{tpu_custom_call.1} parent=1 // pred_region
      %41 = dma.done [#allocation3], 128
    $region17: #{tpu_custom_call.1} parent=1 // pred_fallthru
      _
    %s42 = sadd.s32 0, 0
    %p43 = scmp.lt.s32.totalorder %s42, 0
    %s44 = scalar_select %p43, %s42, 0
    %s45 = smul.addr %s44, 8
    %s46 = scalar_lea.vmem %s0, %s45
    %s47 = sadd.s32 0, 0
    %p48 = scmp.lt.s32.totalorder %s47, 0
    %s49 = scalar_select %p48, %s47, 0
    %s50 = smul.addr %s49, 8
    %s51 = scalar_lea.vmem %s2, %s50
    %s52 = sadd.s32 0, 0
    %p53 = scmp.lt.s32.totalorder %s52, 0
    %s54 = scalar_select %p53, %s52, 0
    %s55 = smul.addr %s54, 8
    %s56 = scalar_lea.vmem %s0, %s55
    %s57 = sadd.s32 0, 0
    %s58 = sadd.s32 0, 0
    %s59 = sadd.s32 0, 0
    %p60 = scmp.lt.s32.totalorder %s59, 0
    %s61 = scalar_select %p60, %s59, 0
    %s62 = smul.addr %s61, 8
    %s63 = scalar_lea.vmem %s2, %s62
    %s64 = sadd.s32 0, 0
    %p65 = scmp.eq.s32.totalorder 0, 0
    // Predicated region
    $region18: #{tpu_custom_call.1} parent=1 // pred_check
      %p66 = pneg %p65
    $region19: #{tpu_custom_call.1} parent=1 // pred_check_branch
      %68 = sbr.rel (%p66) target = $region21
    $region20: #{tpu_custom_call.1} parent=1 // pred_region
      %vm69 = vcmask 0
      %70 = vst.msk [vmem:[#allocation5] sm:$0x1] %vm69, 0.0
    $region21: #{tpu_custom_call.1} parent=1 // pred_fallthru
      _
    %v71 = vld [vmem:[%s56] sm:$0xff]
    %v72 = vld [vmem:[#allocation2] sm:$0xff]
    %v73 = vld [vmem:[%s63] sm:$0xff]
    %v74 = vsub.f32 %v71, %v72
    %v75 = vadd.f32 %v74, 1e-06
    %v76 = vmul.f32 %v75, %v75
    %vm77 = vcmask 261120
    %v78 = vsel %vm77, %v76, 0.0
    %79 = vadd.xlane.f32.xlu0 %v78
    %v80 = vpop.xlane.xlu0 %79
    %v81 = vrsqrt.pop %v80
    %v82 = vmul.f32 %v80, %v81
    %vm83 = vcmp.eq.f32.partialorder %v80, inf
    %v84 = vsel %vm83, %v80, %v82
    %vm85 = vcmp.eq.f32.partialorder %v80, 0.0
    %v86 = vand.u32 %v80, 2147483648
    %v87 = vsel %vm85, %v86, %v84
    %v88 = vsub.f32 2.0, %v87
    %v89 = vmax.f32 %v88, 0.0
    %v90 = vsub.f32 1.0, %v73
    %v91 = vmul.f32 %v90, %v80
    %v92 = vmul.f32 %v73, %v89
    %v93 = vmul.f32 %v92, %v89
    %v94 = vadd.f32 %v91, %v93
    %s95 = sadd.s32 0, 0
    %v96 = vlaneseq
    %v97 = vshrl.u32 %v96, 7
    %s98 = smul.u32 %s95, 8
    %v99 = vstv %s98
    %v100 = vadd.s32 %v97, %v99
    %vm101 = vcmp.lt.s32.totalorder %v100, 8
    %v102 = vsel %vm101, %v94, 0.0
    %v103 = vld [vmem:[#allocation5] sm:$0x1]
    %vm104 = vcmask 7168
    %v105 = vsel %vm104, %v102, 0.0
    %106 = vadd.xlane.f32.xlu0 %v105
    %v107 = vpop.xlane.xlu0 %106
    %v108 = vrot.slane %v107, 4
    %v109 = vadd.f32 %v107, %v108
    %v110 = vrot.slane %v109, 2
    %v111 = vadd.f32 %v109, %v110
    %v112 = vrot.slane %v111, 1
    %v113 = vadd.f32 %v111, %v112
    %s114 = vtos %v113
    %v115 = vstv %s114
    %v116 = vadd.f32 %v103, %v115
    %vm117 = vcmask 0
    %118 = vst.msk [vmem:[#allocation5] sm:$0x1] %vm117, %v116
    // Predicated region
    $region22: #{tpu_custom_call.1} parent=1 // pred_check
      %p119 = pneg %p65
    $region23: #{tpu_custom_call.1} parent=1 // pred_check_branch
      %121 = sbr.rel (%p119) target = $region25
    $region24: #{tpu_custom_call.1} parent=1 // pred_region
      %v122 = vld [vmem:[#allocation5] sm:$0x1]
      %v123 = vmul.f32 %v122, 0.125
      %124 = vst.msk [vmem:[#allocation5] sm:$0x1] %vm117, %v123
    $region25: #{tpu_custom_call.1} parent=1 // pred_fallthru
      _
    // Predicated region
    $region26: #{tpu_custom_call.1} parent=1 // pred_check
      _
    $region27: #{tpu_custom_call.1} parent=1 // pred_check_branch
      %126 = sbr.rel (0) target = $region29
    $region28: #{tpu_custom_call.1} parent=1 // pred_region
      %s128 = ssub.s32 16, 16
      %129 = vsyncadd [#allocation4], %s128
      %s131 = sshll.u32 [#allocation5], 4
      %s132 = int_to_ptr.vmem [resolvable:$true] %s131
      %134 = dma.vmem_to_hbm [thread:$0]  %s132, 16, %s3, [#allocation4]
    $region29: #{tpu_custom_call.1} parent=1 // pred_fallthru
      _
    // Predicated region
    $region30: #{tpu_custom_call.1} parent=1 // pred_check
      _
    $region31: #{tpu_custom_call.1} parent=1 // pred_check_branch
      %136 = sbr.rel (0) target = $region33
    $region32: #{tpu_custom_call.1} parent=1 // pred_region
      %137 = dma.done [#allocation4], 16
    $region33: #{tpu_custom_call.1} parent=1 // pred_fallthru
      _
    %138 = vsyncpa [#allocation3], 1
    %139 = vsyncpa [#allocation4], 1

</llo_original>
